<compile_context>
chip_gen: v7x
topology: tpu7x:2x2x1
jax: 0.10.0
libtpu: 0.0.40
codegen_flags: <defaults>
</compile_context>

<pallas_src>
from functools import partial

import jax
import jax.numpy as jnp
from jax.experimental import pallas as pl
from jax.experimental.pallas import tpu as pltpu


# ---------------------------------------------------------------------------
# Kernels
# ---------------------------------------------------------------------------
def _stats_kernel(x_ref, stat_ref, cnt_ref, mean_ref, m2_ref, *, eps, hw):
    """Streaming per-row mean / sigma over the lane (spatial) axis.

    Grid is (row_tiles, col_tiles); the column axis is the reduction axis.
    Each column block computes a local two-pass (mean, M2) and merges it into
    the running (count, mean, M2) scratch with Chan's parallel-variance
    update.  Out-of-range lanes (partial last column block) are masked.
    """
    j = pl.program_id(1)

    @pl.when(j == 0)
    def _():
        cnt_ref[...] = jnp.zeros_like(cnt_ref)
        mean_ref[...] = jnp.zeros_like(mean_ref)
        m2_ref[...] = jnp.zeros_like(m2_ref)

    x = x_ref[...].astype(jnp.float32)                       # (tr, tc)
    tc = x.shape[-1]
    lane = jax.lax.broadcasted_iota(jnp.int32, x.shape, 1) + j * tc
    valid = lane < hw                                         # mask padded lanes

    n_b = jnp.sum(valid.astype(jnp.float32), axis=-1, keepdims=True)   # (tr, 1)
    s_b = jnp.sum(jnp.where(valid, x, 0.0), axis=-1, keepdims=True)
    mean_b = s_b / jnp.maximum(n_b, 1.0)
    d = jnp.where(valid, x - mean_b, 0.0)
    m2_b = jnp.sum(d * d, axis=-1, keepdims=True)

    n_a, mean_a, m2_a = cnt_ref[...], mean_ref[...], m2_ref[...]
    n = n_a + n_b
    frac = n_b / jnp.maximum(n, 1.0)
    delta = mean_b - mean_a
    cnt_ref[...] = n
    mean_ref[...] = mean_a + delta * frac
    m2_ref[...] = m2_a + m2_b + delta * delta * (n_a * frac)

    @pl.when(j == pl.num_programs(1) - 1)
    def _():
        n_all = cnt_ref[...]
        # torch.Tensor.var(dim=[2,3]) is unbiased -> divide by HW - 1 (guard HW==1).
        var = m2_ref[...] / jnp.maximum(n_all - 1.0, 1.0)
        sig = jnp.sqrt(var + eps)
        stat_ref[...] = jnp.concatenate([mean_ref[...], sig], axis=-1)


def _apply_kernel(x_ref, ab_ref, o_ref):
    """out = x * a + b with per-row (a, b) packed in one (tr, 2) block."""
    ab = ab_ref[...]                                          # (tr, 2) f32
    a = ab[:, 0:1]
    b = ab[:, 1:2]
    o_ref[...] = (x_ref[...].astype(jnp.float32) * a + b).astype(o_ref.dtype)


# ---------------------------------------------------------------------------
# Tiling / VMEM helpers
# ---------------------------------------------------------------------------
def _vmem_limits():
    """(vmem_limit_bytes, per-buffer tile budget) for this TPU generation."""
    try:
        cap = int(pltpu.get_tpu_info().vmem_capacity_bytes)
    except Exception:
        cap = 128 * 1024 * 1024                    # v5e/v6e physical VMEM
    # Explicit scoped-VMEM limit (defaults are only 16/32 MiB): ~3/4 of
    # physical, capped at 96 MiB -> 96 MiB on v5e/v6e, ~48 MiB on v7x (64 MiB).
    vmem_limit = min((cap * 3) // 4, 96 * 1024 * 1024)
    # The apply pass keeps ~4 block buffers live (2x double-buffered input +
    # 2x output) plus small (tr, 2) coefficients and compiler scratch.
    reserve = 6 * 1024 * 1024
    tile_budget = min((vmem_limit - reserve) // 4, 16 * 1024 * 1024)
    tile_budget = max(tile_budget, 1 * 1024 * 1024)
    return int(vmem_limit), int(tile_budget)


def _choose_tiles(bc, hw, itemsize, tile_budget_bytes):
    """Pick (tile_r, tile_c) for one buffer of a (bc, hw) block in x.dtype bytes."""
    row_mult = max(8, 32 // max(itemsize, 1))      # sublane packing: 8 f32 / 16 bf16 / 32 int8
    min_rows = min(bc, row_mult)                   # block equal to the full dim is legal

    if min_rows * hw * itemsize <= tile_budget_bytes:
        # Whole rows fit in one block: tile over rows only.
        tile_c = hw
        if bc <= row_mult:
            tile_r = bc
        else:
            max_rows = (tile_budget_bytes // (hw * itemsize) // row_mult) * row_mult
            tile_r = min(max_rows, (bc // row_mult) * row_mult)
            if bc >= 2 * row_mult:
                # Keep >= 2 row tiles so both v7x TensorCores get work.
                half = max(row_mult, (((bc + 1) // 2) // row_mult) * row_mult)
                tile_r = min(tile_r, half)
            tile_r = max(tile_r, row_mult)
    else:
        # Huge spatial extent: minimum-height rows and tile the lane axis too.
        tile_r = min_rows
        lanes = max(128, tile_budget_bytes // (tile_r * itemsize))
        tile_c = min((lanes // 128) * 128, hw)
    return tile_r, tile_c


def _sample_mix(key, batch, p, alpha, mix):
    """Stochastic pieces of MixStyle (gate, Beta lambda, batch permutation)."""
    k_gate, k_lmda, k_perm = jax.random.split(key, 3)
    gate = jax.random.uniform(k_gate) <= p                    # apply mix?
    lmda = jax.random.beta(k_lmda, alpha, alpha, shape=(batch, 1)).astype(jnp.float32)
    if mix == "random":
        perm = jax.random.permutation(k_perm, batch)
    elif mix == "crossdomain":
        # Like the torch module, assumes an even batch (chunk(2) semantics).
        half = batch // 2
        perm = jnp.arange(batch - 1, -1, -1)
        kb, ka = jax.random.split(k_perm)
        perm_b = perm[:half][jax.random.permutation(kb, half)]
        perm_a = perm[half:][jax.random.permutation(ka, half)]
        perm = jnp.concatenate([perm_b, perm_a], axis=0)
    else:
        raise NotImplementedError(mix)
    return gate, lmda, perm


# ---------------------------------------------------------------------------
# Forward
# ---------------------------------------------------------------------------
def mixstyle_forward(x, key, *, p=0.5, alpha=0.1, eps=1e-6,
                     mix="crossdomain", training=True, donate_x=False):
    """MixStyle forward.  x: (B, C, H, W)."""
    if not training:
        return x

    B, C, H, W = x.shape
    gate, lmda, perm = _sample_mix(key, B, p, alpha, mix)

    bc, hw = B * C, H * W
    vmem_limit, tile_budget = _vmem_limits()
    tile_r, tile_c = _choose_tiles(bc, hw, jnp.dtype(x.dtype).itemsize, tile_budget)
    grid = (pl.cdiv(bc, tile_r), pl.cdiv(hw, tile_c))
    x_spec = pl.BlockSpec((tile_r, tile_c), lambda i, j: (i, j))
    rc_spec = pl.BlockSpec((tile_r, 2), lambda i, j: (i, 0))

    def _mixed(x):
        x_flat = x.reshape(bc, hw)                            # view, no copy

        # Pass 1: per-(b, c) mean / sigma, packed as one (bc, 2) output.
        stats = pl.pallas_call(
            partial(_stats_kernel, eps=eps, hw=hw),
            out_shape=jax.ShapeDtypeStruct((bc, 2), jnp.float32),
            grid=grid,
            in_specs=[x_spec],
            out_specs=rc_spec,
            scratch_shapes=[pltpu.VMEM((tile_r, 1), jnp.float32)] * 3,
            compiler_params=pltpu.CompilerParams(
                dimension_semantics=("parallel", "arbitrary"),
                vmem_limit_bytes=vmem_limit),
        )(x_flat)

        # Tiny (B, C) mixing math — scalar glue, stays in JAX.
        mu = jax.lax.stop_gradient(stats[:, 0].reshape(B, C))     # .detach()
        sig = jax.lax.stop_gradient(stats[:, 1].reshape(B, C))
        mu_mix = mu * lmda + mu[perm] * (1.0 - lmda)
        sig_mix = sig * lmda + sig[perm] * (1.0 - lmda)
        a = sig_mix / sig                                     # per-(b, c) scale
        b = mu_mix - mu * a                                   # per-(b, c) shift
        ab = jnp.stack([a, b], axis=-1).reshape(bc, 2).astype(jnp.float32)

        # Pass 2: out = x * a + b (one FMA per element, lane-dense tiles).
        out_flat = pl.pallas_call(
            _apply_kernel,
            out_shape=jax.ShapeDtypeStruct((bc, hw), x.dtype),
            grid=grid,
            in_specs=[x_spec, rc_spec],
            out_specs=x_spec,
            input_output_aliases={0: 0} if donate_x else {},
            compiler_params=pltpu.CompilerParams(
                dimension_semantics=("parallel", "parallel"),
                vmem_limit_bytes=vmem_limit),
        )(x_flat, ab)
        return out_flat.reshape(B, C, H, W)

    # random.random() > p gate from the torch module, done with JAX randomness.
    return jax.lax.cond(gate, _mixed, lambda t: t, x)


# ---------------------------------------------------------------------------
# Pure-JAX reference (same randomness) for a correctness check.
# ---------------------------------------------------------------------------
def mixstyle_reference(x, key, *, p=0.5, alpha=0.1, eps=1e-6,
                       mix="crossdomain", training=True):
    if not training:
        return x
    B = x.shape[0]
    gate, lmda, perm = _sample_mix(key, B, p, alpha, mix)
    mu = jnp.mean(x, axis=(2, 3), keepdims=True)
    var = jnp.var(x, axis=(2, 3), keepdims=True, ddof=1)      # unbiased, like torch
    sig = jnp.sqrt(var + eps)
    x_normed = (x - mu) / sig
    lm = lmda[:, :, None, None]
    mu_mix = mu * lm + mu[perm] * (1.0 - lm)
    sig_mix = sig * lm + sig[perm] * (1.0 - lm)
    mixed = x_normed * sig_mix + mu_mix
    return jnp.where(gate, mixed, x)


if __name__ == "__main__":
    key = jax.random.PRNGKey(0)
    k_x, k_ms, k_x2, k_ms2 = jax.random.split(key, 4)

    # Case 1: small shape consistent with the module (batch=2, channels=4, 16x16).
    B, C, H, W = 2, 4, 16, 16
    x = jax.random.normal(k_x, (B, C, H, W), jnp.float32)
    fwd = jax.jit(partial(mixstyle_forward, p=1.0, alpha=0.1, eps=1e-6,
                          mix="crossdomain", training=True))
    out = jax.block_until_ready(fwd(x, k_ms))
    ref = mixstyle_reference(x, k_ms, p=1.0, alpha=0.1, eps=1e-6,
                             mix="crossdomain", training=True)
    assert out.shape == (B, C, H, W)
    assert bool(jnp.all(jnp.isfinite(out)))
    assert bool(jnp.allclose(out, ref, rtol=1e-4, atol=1e-4))

    # Case 2: multiple row tiles + partial last row block + hw < 128 lanes.
    B2, C2, H2, W2 = 2, 10, 7, 7
    x2 = jax.random.normal(k_x2, (B2, C2, H2, W2), jnp.float32) * 3.0 + 5.0
    out2 = jax.block_until_ready(fwd(x2, k_ms2))
    ref2 = mixstyle_reference(x2, k_ms2, p=1.0, alpha=0.1, eps=1e-6,
                              mix="crossdomain", training=True)
    assert out2.shape == (B2, C2, H2, W2)
    assert bool(jnp.all(jnp.isfinite(out2)))
    assert bool(jnp.allclose(out2, ref2, rtol=1e-4, atol=1e-4))

    print("KERNEL_OK")
</pallas_src>

<mosaic_0001>
module attributes {stable_mosaic.version = 11 : i64} {
  func.func @_apply_kernel(%arg0: i32, %arg1: i32, %arg2: memref<8x256xf32, #tpu.memory_space<vmem>>, %arg3: memref<8x2xf32, #tpu.memory_space<vmem>>, %arg4: memref<8x256xf32, #tpu.memory_space<vmem>>) attributes {dimension_semantics = [#tpu.dimension_semantics<parallel>, #tpu.dimension_semantics<parallel>], iteration_bounds = array<i64: 1, 1>, scalar_prefetch = 0 : i64, scratch_operands = 0 : i64, tpu.core_type = #tpu.core_type<tc>, window_params = [{transform_indices = @transform_0, window_bounds = array<i64: 8, 256>}, {transform_indices = @transform_1, window_bounds = array<i64: 8, 2>}, {transform_indices = @transform_2, window_bounds = array<i64: 8, 256>}]} {
    %c0 = arith.constant 0 : index
    %c0_0 = arith.constant 0 : index
    %0 = vector.load %arg3[%c0, %c0_0] : memref<8x2xf32, #tpu.memory_space<vmem>>, vector<8x2xf32>
    %1 = vector.extract_strided_slice %0 {offsets = [0, 0], sizes = [8, 1], strides = [1, 1]} : vector<8x2xf32> to vector<8x1xf32>
    %2 = vector.extract_strided_slice %0 {offsets = [0, 1], sizes = [8, 1], strides = [1, 1]} : vector<8x2xf32> to vector<8x1xf32>
    %c0_1 = arith.constant 0 : index
    %c0_2 = arith.constant 0 : index
    %3 = vector.load %arg2[%c0_1, %c0_2] : memref<8x256xf32, #tpu.memory_space<vmem>>, vector<8x256xf32>
    %4 = vector.broadcast %1 : vector<8x1xf32> to vector<8x256xf32>
    %5 = arith.mulf %3, %4 : vector<8x256xf32>
    %6 = vector.broadcast %2 : vector<8x1xf32> to vector<8x256xf32>
    %7 = arith.addf %5, %6 : vector<8x256xf32>
    %c0_3 = arith.constant 0 : index
    %c0_4 = arith.constant 0 : index
    %8 = vector.load %arg4[%c0_3, %c0_4] : memref<8x256xf32, #tpu.memory_space<vmem>>, vector<8x256xf32>
    tpu.vector_store %arg4[%c0_3, %c0_4], %7 {strides = array<i32>} : memref<8x256xf32, #tpu.memory_space<vmem>>, vector<8x256xf32>,
    return
  }
  func.func @transform_0(%arg0: i32, %arg1: i32) -> (i32, i32) {
    %c0_i32 = arith.constant 0 : i32
    return %arg0, %arg1 : i32, i32
  }
  func.func @transform_1(%arg0: i32, %arg1: i32) -> (i32, i32) {
    %c0_i32 = arith.constant 0 : i32
    %c0_i32_0 = arith.constant 0 : i32
    return %arg0, %c0_i32 : i32, i32
  }
  func.func @transform_2(%arg0: i32, %arg1: i32) -> (i32, i32) {
    %c0_i32 = arith.constant 0 : i32
    return %arg0, %arg1 : i32, i32
  }
}

module attributes {stable_mosaic.version = 11 : i64} {
  func.func @_stats_kernel(%arg0: i32, %arg1: i32, %arg2: memref<8x256xf32, #tpu.memory_space<vmem>>, %arg3: memref<8x2xf32, #tpu.memory_space<vmem>>, %arg4: memref<8x1xf32, #tpu.memory_space<vmem>>, %arg5: memref<8x1xf32, #tpu.memory_space<vmem>>, %arg6: memref<8x1xf32, #tpu.memory_space<vmem>>) attributes {dimension_semantics = [#tpu.dimension_semantics<parallel>, #tpu.dimension_semantics<arbitrary>], iteration_bounds = array<i64: 1, 1>, scalar_prefetch = 0 : i64, scratch_operands = 3 : i64, tpu.core_type = #tpu.core_type<tc>, window_params = [{transform_indices = @transform_0, window_bounds = array<i64: 8, 256>}, {transform_indices = @transform_1, window_bounds = array<i64: 8, 2>}]} {
    %c0_i32 = arith.constant 0 : i32
    %0 = arith.cmpi eq, %arg1, %c0_i32 : i32
    %1 = arith.extui %0 : i1 to i32
    %c0_i32_0 = arith.constant 0 : i32
    %2 = arith.cmpi ne, %1, %c0_i32_0 : i32
    scf.if %2 {
      %cst_23 = arith.constant 0.000000e+00 : f32
      %49 = vector.broadcast %cst_23 : f32 to vector<8x1xf32>
      %c0_24 = arith.constant 0 : index
      %c0_25 = arith.constant 0 : index
      %50 = vector.load %arg4[%c0_24, %c0_25] : memref<8x1xf32, #tpu.memory_space<vmem>>, vector<8x1xf32>
      tpu.vector_store %arg4[%c0_24, %c0_25], %49 {strides = array<i32>} : memref<8x1xf32, #tpu.memory_space<vmem>>, vector<8x1xf32>,
      %cst_26 = arith.constant 0.000000e+00 : f32
      %51 = vector.broadcast %cst_26 : f32 to vector<8x1xf32>
      %c0_27 = arith.constant 0 : index
      %c0_28 = arith.constant 0 : index
      %52 = vector.load %arg5[%c0_27, %c0_28] : memref<8x1xf32, #tpu.memory_space<vmem>>, vector<8x1xf32>
      tpu.vector_store %arg5[%c0_27, %c0_28], %51 {strides = array<i32>} : memref<8x1xf32, #tpu.memory_space<vmem>>, vector<8x1xf32>,
      %cst_29 = arith.constant 0.000000e+00 : f32
      %53 = vector.broadcast %cst_29 : f32 to vector<8x1xf32>
      %c0_30 = arith.constant 0 : index
      %c0_31 = arith.constant 0 : index
      %54 = vector.load %arg6[%c0_30, %c0_31] : memref<8x1xf32, #tpu.memory_space<vmem>>, vector<8x1xf32>
      tpu.vector_store %arg6[%c0_30, %c0_31], %53 {strides = array<i32>} : memref<8x1xf32, #tpu.memory_space<vmem>>, vector<8x1xf32>,
    } else {
    }
    %c0 = arith.constant 0 : index
    %c0_1 = arith.constant 0 : index
    %3 = vector.load %arg2[%c0, %c0_1] : memref<8x256xf32, #tpu.memory_space<vmem>>, vector<8x256xf32>
    %4 = tpu.iota {dimensions = array<i32: 1>} : vector<8x256xi32>
    %c256_i32 = arith.constant 256 : i32
    %5 = arith.muli %arg1, %c256_i32 : i32
    %6 = vector.broadcast %5 : i32 to vector<8x256xi32>
    %7 = arith.addi %4, %6 : vector<8x256xi32>
    %c256_i32_2 = arith.constant 256 : i32
    %8 = vector.broadcast %c256_i32_2 : i32 to vector<8x256xi32>
    %9 = arith.cmpi slt, %7, %8 : vector<8x256xi32>
    %10 = arith.extui %9 : vector<8x256xi1> to vector<8x256xi32>
    %11 = arith.sitofp %10 : vector<8x256xi32> to vector<8x256xf32>
    %cst = arith.constant dense<0.000000e+00> : vector<8xf32>
    %12 = vector.multi_reduction <add>, %11, %cst [1] : vector<8x256xf32> to vector<8xf32>
    %13 = vector.shape_cast %12 : vector<8xf32> to vector<8x1xf32>
    %cst_3 = arith.constant 0.000000e+00 : f32
    %14 = vector.broadcast %cst_3 : f32 to vector<8x256xf32>
    %15 = arith.select %9, %3, %14 : vector<8x256xi1>, vector<8x256xf32>
    %cst_4 = arith.constant dense<0.000000e+00> : vector<8xf32>
    %16 = vector.multi_reduction <add>, %15, %cst_4 [1] : vector<8x256xf32> to vector<8xf32>
    %17 = vector.shape_cast %16 : vector<8xf32> to vector<8x1xf32>
    %cst_5 = arith.constant 1.000000e+00 : f32
    %18 = vector.broadcast %cst_5 : f32 to vector<8x1xf32>
    %19 = arith.maximumf %13, %18 : vector<8x1xf32>
    %20 = arith.divf %17, %19 : vector<8x1xf32>
    %21 = vector.broadcast %20 : vector<8x1xf32> to vector<8x256xf32>
    %22 = arith.subf %3, %21 : vector<8x256xf32>
    %cst_6 = arith.constant 0.000000e+00 : f32
    %23 = vector.broadcast %cst_6 : f32 to vector<8x256xf32>
    %24 = arith.select %9, %22, %23 : vector<8x256xi1>, vector<8x256xf32>
    %25 = arith.mulf %24, %24 : vector<8x256xf32>
    %cst_7 = arith.constant dense<0.000000e+00> : vector<8xf32>
    %26 = vector.multi_reduction <add>, %25, %cst_7 [1] : vector<8x256xf32> to vector<8xf32>
    %27 = vector.shape_cast %26 : vector<8xf32> to vector<8x1xf32>
    %c0_8 = arith.constant 0 : index
    %c0_9 = arith.constant 0 : index
    %28 = vector.load %arg4[%c0_8, %c0_9] : memref<8x1xf32, #tpu.memory_space<vmem>>, vector<8x1xf32>
    %c0_10 = arith.constant 0 : index
    %c0_11 = arith.constant 0 : index
    %29 = vector.load %arg5[%c0_10, %c0_11] : memref<8x1xf32, #tpu.memory_space<vmem>>, vector<8x1xf32>
    %c0_12 = arith.constant 0 : index
    %c0_13 = arith.constant 0 : index
    %30 = vector.load %arg6[%c0_12, %c0_13] : memref<8x1xf32, #tpu.memory_space<vmem>>, vector<8x1xf32>
    %31 = arith.addf %28, %13 : vector<8x1xf32>
    %cst_14 = arith.constant 1.000000e+00 : f32
    %32 = vector.broadcast %cst_14 : f32 to vector<8x1xf32>
    %33 = arith.maximumf %31, %32 : vector<8x1xf32>
    %34 = arith.divf %13, %33 : vector<8x1xf32>
    %35 = arith.subf %20, %29 : vector<8x1xf32>
    %c0_15 = arith.constant 0 : index
    %c0_16 = arith.constant 0 : index
    %36 = vector.load %arg4[%c0_15, %c0_16] : memref<8x1xf32, #tpu.memory_space<vmem>>, vector<8x1xf32>
    tpu.vector_store %arg4[%c0_15, %c0_16], %31 {strides = array<i32>} : memref<8x1xf32, #tpu.memory_space<vmem>>, vector<8x1xf32>,
    %37 = arith.mulf %35, %34 : vector<8x1xf32>
    %38 = arith.addf %29, %37 : vector<8x1xf32>
    %c0_17 = arith.constant 0 : index
    %c0_18 = arith.constant 0 : index
    %39 = vector.load %arg5[%c0_17, %c0_18] : memref<8x1xf32, #tpu.memory_space<vmem>>, vector<8x1xf32>
    tpu.vector_store %arg5[%c0_17, %c0_18], %38 {strides = array<i32>} : memref<8x1xf32, #tpu.memory_space<vmem>>, vector<8x1xf32>,
    %40 = arith.addf %30, %27 : vector<8x1xf32>
    %41 = arith.mulf %35, %35 : vector<8x1xf32>
    %42 = arith.mulf %28, %34 : vector<8x1xf32>
    %43 = arith.mulf %41, %42 : vector<8x1xf32>
    %44 = arith.addf %40, %43 : vector<8x1xf32>
    %c0_19 = arith.constant 0 : index
    %c0_20 = arith.constant 0 : index
    %45 = vector.load %arg6[%c0_19, %c0_20] : memref<8x1xf32, #tpu.memory_space<vmem>>, vector<8x1xf32>
    tpu.vector_store %arg6[%c0_19, %c0_20], %44 {strides = array<i32>} : memref<8x1xf32, #tpu.memory_space<vmem>>, vector<8x1xf32>,
    %c0_i32_21 = arith.constant 0 : i32
    %46 = arith.cmpi eq, %arg1, %c0_i32_21 : i32
    %47 = arith.extui %46 : i1 to i32
    %c0_i32_22 = arith.constant 0 : i32
    %48 = arith.cmpi ne, %47, %c0_i32_22 : i32
    scf.if %48 {
      %c0_23 = arith.constant 0 : index
      %c0_24 = arith.constant 0 : index
      %49 = vector.load %arg4[%c0_23, %c0_24] : memref<8x1xf32, #tpu.memory_space<vmem>>, vector<8x1xf32>
      %c0_25 = arith.constant 0 : index
      %c0_26 = arith.constant 0 : index
      %50 = vector.load %arg6[%c0_25, %c0_26] : memref<8x1xf32, #tpu.memory_space<vmem>>, vector<8x1xf32>
      %cst_27 = arith.constant 1.000000e+00 : f32
      %51 = vector.broadcast %cst_27 : f32 to vector<8x1xf32>
      %52 = arith.subf %49, %51 : vector<8x1xf32>
      %cst_28 = arith.constant 1.000000e+00 : f32
      %53 = vector.broadcast %cst_28 : f32 to vector<8x1xf32>
      %54 = arith.maximumf %52, %53 : vector<8x1xf32>
      %55 = arith.divf %50, %54 : vector<8x1xf32>
      %cst_29 = arith.constant 9.99999997E-7 : f32
      %56 = vector.broadcast %cst_29 : f32 to vector<8x1xf32>
      %57 = arith.addf %55, %56 : vector<8x1xf32>
      %58 = math.sqrt %57 : vector<8x1xf32>
      %c0_30 = arith.constant 0 : index
      %c0_31 = arith.constant 0 : index
      %59 = vector.load %arg5[%c0_30, %c0_31] : memref<8x1xf32, #tpu.memory_space<vmem>>, vector<8x1xf32>
      %60 = tpu.concatenate %59, %58 in 1 : vector<8x1xf32>, vector<8x1xf32> -> vector<8x2xf32>
      %c0_32 = arith.constant 0 : index
      %c0_33 = arith.constant 0 : index
      %61 = vector.load %arg3[%c0_32, %c0_33] : memref<8x2xf32, #tpu.memory_space<vmem>>, vector<8x2xf32>
      tpu.vector_store %arg3[%c0_32, %c0_33], %60 {strides = array<i32>} : memref<8x2xf32, #tpu.memory_space<vmem>>, vector<8x2xf32>,
    } else {
    }
    return
  }
  func.func @transform_0(%arg0: i32, %arg1: i32) -> (i32, i32) {
    %c0_i32 = arith.constant 0 : i32
    return %arg0, %arg1 : i32, i32
  }
  func.func @transform_1(%arg0: i32, %arg1: i32) -> (i32, i32) {
    %c0_i32 = arith.constant 0 : i32
    %c0_i32_0 = arith.constant 0 : i32
    return %arg0, %c0_i32 : i32, i32
  }
}

</mosaic_0001>

<llo_original>
// kernel: squeeze.40
$region0: #{squeeze.40}
  %s0 = inlined_call_operand.vmem [shape: f32[8], index: 0, kind: input, shape index: {}]
  %s1 = inlined_call_operand.vmem [shape: f32[2,4], index: 1, kind: output, shape index: {}]
  $region1: #{squeeze.40} parent=0
    #allocation0 [shape = 'u8[4096]{0}', space=vmem, size = 0x1000, scoped, tag = 'scoped mem for output reshape']
    #allocation1 [shape = 'u8[4096]{0}', space=vmem, size = 0x1000, scoped, tag = 'scoped mem for input reshape']
    %s3 = sshllo.u32 0, 1
    %v4 = vld [vmem:[%s0] sm:%s3]
    %5 = vst [vmem:[#allocation1] sm:%s3] %v4
    %v6 = vld [vmem:[#allocation1] sm:$0x1]
    %vm7 = vcmask 31744
    %8 = vst.msk [vmem:[#allocation0] sm:$0x1] %vm7, %v6
    %v9 = vld [vmem:[#allocation1] sm:$0x1]
    %10 = vrot.lane.b32.xlu0 %v9, 124
    %v11 = vpop.permute.xlu0 %10
    %vm12 = vcmask 31744
    %s13 = scalar_lea.vmem [#allocation0], 1
    %14 = vst.msk [vmem:[%s13] sm:$0x1] %vm12, %v11
    %s16 = sshllo.u32 0, 2
    %v18 = vld [vmem:[#allocation0] sm:%s16]
    %s19 = sshllo.u32 0, 2
    %20 = vst [vmem:[%s1] sm:%s19] %v18

// kernel: branch_1_fun.3
$region0: #{branch_1_fun.3}
  #allocation0 [shape = 'u32[]', space=smem, size = 0x4, offset = 0x4, fixed_abs, tag = 'smem constant byte address 0x4 - core index']
  #allocation1 [shape = 'u32[144,128]{1,0:T(1,128)}', space=vmem, size = 0x12000, scoped, tag = 'internal scratch']
  %s0 = inlined_call_operand.hbm [shape: f32[8,256], index: 0, kind: input, shape index: {}]
  %s1 = inlined_call_operand.hbm [shape: f32[8,2], index: 1, kind: input, shape index: {}]
  %s2 = inlined_call_operand.hbm [shape: f32[8,256], index: 2, kind: output, shape index: {}]
  %s3 = sld [smem:[#allocation0]]
  $region26: #{branch_1_fun.3} parent=0
    _
  %s5 = ssub.s32 1, %s3
  %s6 = scalar_select 0, %s5, %s3
  $region1: #{branch_1_fun.3} parent=0
    #allocation2 [shape = 'u8[8192]{0}', space=vmem, size = 0x2000, scoped, tag = 'input window, operand 0, single buffered']
    #allocation3 [shape = 's32[1]{0}', space=sflag, size = 0x4, scoped, tag = 'scoped memory for branch_1_fun.3']
    #allocation4 [shape = 's32[1]{0}', space=sflag, size = 0x4, scoped, tag = 'scoped memory for branch_1_fun.3']
    #allocation5 [shape = 'u8[4096]{0}', space=vmem, size = 0x1000, scoped, tag = 'input window, operand 1, single buffered']
    #allocation6 [shape = 's32[1]{0}', space=sflag, size = 0x4, scoped, tag = 'scoped memory for branch_1_fun.3']
    #allocation7 [shape = 'u8[8192]{0}', space=vmem, size = 0x2000, scoped, tag = 'output window, operand 0, single buffered']
    %7 = vsyncpa [#allocation3], 0
    %8 = vsyncpa [#allocation6], 0
    %9 = vsyncpa [#allocation4], 0
    // Predicated region
    $region2: #{branch_1_fun.3} parent=1 // pred_check
      _
    $region3: #{branch_1_fun.3} parent=1 // pred_check_branch
      %11 = sbr.rel (0) target = $region5
    $region4: #{branch_1_fun.3} parent=1 // pred_region
      %s13 = ssub.s32 256, 256
      %14 = vsyncadd [#allocation3], %s13
      %s16 = sshll.u32 [#allocation2], 4
      %s17 = int_to_ptr.vmem [resolvable:$true] %s16
      %19 = dma.hbm_to_vmem [thread:$0]  %s0, 256, %s17, [#allocation3]
    $region5: #{branch_1_fun.3} parent=1 // pred_fallthru
      _
    // Predicated region
    $region6: #{branch_1_fun.3} parent=1 // pred_check
      _
    $region7: #{branch_1_fun.3} parent=1 // pred_check_branch
      %21 = sbr.rel (0) target = $region9
    $region8: #{branch_1_fun.3} parent=1 // pred_region
      %s23 = ssub.s32 128, 128
      %24 = vsyncadd [#allocation6], %s23
      %s26 = sshll.u32 [#allocation5], 4
      %s27 = int_to_ptr.vmem [resolvable:$true] %s26
      %29 = dma.hbm_to_vmem [thread:$0]  %s1, 128, %s27, [#allocation6]
    $region9: #{branch_1_fun.3} parent=1 // pred_fallthru
      _
    // Predicated region
    $region10: #{branch_1_fun.3} parent=1 // pred_check
      _
    $region11: #{branch_1_fun.3} parent=1 // pred_check_branch
      %31 = sbr.rel (0) target = $region13
    $region12: #{branch_1_fun.3} parent=1 // pred_region
      %32 = dma.done [#allocation3], 256
    $region13: #{branch_1_fun.3} parent=1 // pred_fallthru
      _
    // Predicated region
    $region14: #{branch_1_fun.3} parent=1 // pred_check
      _
    $region15: #{branch_1_fun.3} parent=1 // pred_check_branch
      %34 = sbr.rel (0) target = $region17
    $region16: #{branch_1_fun.3} parent=1 // pred_region
      %35 = dma.done [#allocation6], 128
    $region17: #{branch_1_fun.3} parent=1 // pred_fallthru
      _
    %v36 = vld [vmem:[#allocation5] sm:$0xff]
    %v37 = vld [vmem:[#allocation2] sm:$0xff]
    %v38 = vld [vmem:[#allocation2 + $0x8] sm:$0xff]
    %40 = vset.pattern.permute.xlu0 0
    %41 = vperm.xlu0 %40, %v36
    %v42 = vpop.permute.xlu0 %41
    %v44 = vmul.f32 %v37, %v42
    %v45 = vmul.f32 %v38, %v42
    %46 = vset.pattern.permute.xlu0 1
    %47 = vperm.xlu0 %46, %v36
    %v48 = vpop.permute.xlu0 %47
    %v50 = vadd.f32 %v44, %v48
    %v51 = vadd.f32 %v45, %v48
    %52 = vst [vmem:[#allocation7] sm:$0xff] %v50
    %53 = vst [vmem:[#allocation7 + $0x8] sm:$0xff] %v51
    // Predicated region
    $region18: #{branch_1_fun.3} parent=1 // pred_check
      _
    $region19: #{branch_1_fun.3} parent=1 // pred_check_branch
      %55 = sbr.rel (0) target = $region21
    $region20: #{branch_1_fun.3} parent=1 // pred_region
      %s57 = ssub.s32 256, 256
      %58 = vsyncadd [#allocation4], %s57
      %s60 = sshll.u32 [#allocation7], 4
      %s61 = int_to_ptr.vmem [resolvable:$true] %s60
      %63 = dma.vmem_to_hbm [thread:$0]  %s61, 256, %s2, [#allocation4]
    $region21: #{branch_1_fun.3} parent=1 // pred_fallthru
      _
    // Predicated region
    $region22: #{branch_1_fun.3} parent=1 // pred_check
      _
    $region23: #{branch_1_fun.3} parent=1 // pred_check_branch
      %65 = sbr.rel (0) target = $region25
    $region24: #{branch_1_fun.3} parent=1 // pred_region
      %66 = dma.done [#allocation4], 256
    $region25: #{branch_1_fun.3} parent=1 // pred_fallthru
      _
    %67 = vsyncpa [#allocation3], 1
    %68 = vsyncpa [#allocation6], 1
    %69 = vsyncpa [#allocation4], 1

// kernel: branch_1_fun.2
$region0: #{branch_1_fun.2}
  #allocation0 [shape = 'u32[]', space=smem, size = 0x4, offset = 0x4, fixed_abs, tag = 'smem constant byte address 0x4 - core index']
  #allocation1 [shape = 'u32[144,128]{1,0:T(1,128)}', space=vmem, size = 0x12000, scoped, tag = 'internal scratch']
  #allocation2 [shape = 'f32[8,1]{1,0:T(8,128)}', space=vmem, size = 0x1000, scoped, tag = 'scratch operand']
  #allocation3 [shape = 'f32[8,1]{1,0:T(8,128)}', space=vmem, size = 0x1000, scoped, tag = 'scratch operand']
  #allocation4 [shape = 'f32[8,1]{1,0:T(8,128)}', space=vmem, size = 0x1000, scoped, tag = 'scratch operand']
  %s0 = inlined_call_operand.hbm [shape: f32[8,256], index: 0, kind: input, shape index: {}]
  %s1 = inlined_call_operand.hbm [shape: f32[8,2], index: 1, kind: output, shape index: {}]
  %s2 = sld [smem:[#allocation0]]
  $region26: #{branch_1_fun.2} parent=0
    _
  %s4 = ssub.s32 1, %s2
  %s5 = scalar_select 0, %s4, %s2
  $region1: #{branch_1_fun.2} parent=0
    #allocation5 [shape = 'u8[8192]{0}', space=vmem, size = 0x2000, scoped, tag = 'input window, operand 0, single buffered']
    #allocation6 [shape = 's32[1]{0}', space=sflag, size = 0x4, scoped, tag = 'scoped memory for branch_1_fun.2']
    #allocation7 [shape = 's32[1]{0}', space=sflag, size = 0x4, scoped, tag = 'scoped memory for branch_1_fun.2']
    #allocation8 [shape = 'u8[4096]{0}', space=vmem, size = 0x1000, scoped, tag = 'output window, operand 0, single buffered']
    %6 = vsyncpa [#allocation6], 0
    %7 = vsyncpa [#allocation7], 0
    // Predicated region
    $region2: #{branch_1_fun.2} parent=1 // pred_check
      _
    $region3: #{branch_1_fun.2} parent=1 // pred_check_branch
      %9 = sbr.rel (0) target = $region5
    $region4: #{branch_1_fun.2} parent=1 // pred_region
      %s11 = ssub.s32 256, 256
      %12 = vsyncadd [#allocation6], %s11
      %s14 = sshll.u32 [#allocation5], 4
      %s15 = int_to_ptr.vmem [resolvable:$true] %s14
      %17 = dma.hbm_to_vmem [thread:$0]  %s0, 256, %s15, [#allocation6]
    $region5: #{branch_1_fun.2} parent=1 // pred_fallthru
      _
    // Predicated region
    $region6: #{branch_1_fun.2} parent=1 // pred_check
      _
    $region7: #{branch_1_fun.2} parent=1 // pred_check_branch
      %19 = sbr.rel (0) target = $region9
    $region8: #{branch_1_fun.2} parent=1 // pred_region
      %20 = dma.done [#allocation6], 256
    $region9: #{branch_1_fun.2} parent=1 // pred_fallthru
      _
    %p21 = scmp.eq.s32.totalorder 0, 0
    // Predicated region
    $region10: #{branch_1_fun.2} parent=1 // pred_check
      %p22 = pneg %p21
    $region11: #{branch_1_fun.2} parent=1 // pred_check_branch
      %24 = sbr.rel (%p22) target = $region13
    $region12: #{branch_1_fun.2} parent=1 // pred_region
      %vm25 = vcmask 7168
      %26 = vst.msk [vmem:[#allocation2] sm:$0xff] %vm25, 0.0
      %27 = vst.msk [vmem:[#allocation3] sm:$0xff] %vm25, 0.0
      %28 = vst.msk [vmem:[#allocation4] sm:$0xff] %vm25, 0.0
    $region13: #{branch_1_fun.2} parent=1 // pred_fallthru
      _
    %v29 = vld [vmem:[#allocation5] sm:$0xff]
    %v30 = vld [vmem:[#allocation5 + $0x8] sm:$0xff]
    %v31 = vlaneseq
    %v32 = vand.u32 %v31, 127
    %v33 = vadd.s32 %v32, 128
    %s34 = smul.u32 0, 256
    %v35 = vstv %s34
    %v36 = vadd.s32 %v32, %v35
    %v37 = vadd.s32 %v33, %v35
    %vm38 = vcmp.lt.s32.totalorder %v36, 256
    %vm39 = vcmp.lt.s32.totalorder %v37, 256
    %v40 = vsel %vm38, 1, 0
    %v41 = vsel %vm39, 1, 0
    %v42 = vcvt.s32.f32 %v40
    %v43 = vcvt.s32.f32 %v41
    %v44 = vadd.f32 %v42, %v43
    %45 = vadd.xlane.f32.xlu0 %v44
    %v46 = vpop.xlane.xlu0 %45
    %v47 = vsel %vm38, %v29, 0.0
    %v48 = vsel %vm39, %v30, 0.0
    %v49 = vadd.f32 %v47, %v48
    %50 = vadd.xlane.f32.xlu0 %v49
    %v51 = vpop.xlane.xlu0 %50
    %v52 = vmax.f32 %v46, 1.0
    %v53 = vrcp.pop %v52
    %v54 = vmul.f32 %v51, %v53
    %v55 = vsub.f32 %v29, %v54
    %v56 = vsub.f32 %v30, %v54
    %v57 = vsel %vm38, %v55, 0.0
    %v58 = vsel %vm39, %v56, 0.0
    %v59 = vmul.f32 %v57, %v57
    %v60 = vmul.f32 %v58, %v58
    %v61 = vadd.f32 %v59, %v60
    %62 = vadd.xlane.f32.xlu0 %v61
    %v63 = vpop.xlane.xlu0 %62
    %v64 = vld [vmem:[#allocation2] sm:$0xff]
    %v65 = vld [vmem:[#allocation3] sm:$0xff]
    %v66 = vld [vmem:[#allocation4] sm:$0xff]
    %v67 = vadd.f32 %v64, %v46
    %v68 = vmax.f32 %v67, 1.0
    %v69 = vrcp.pop %v68
    %v70 = vmul.f32 %v46, %v69
    %v71 = vsub.f32 %v54, %v65
    %vm72 = vcmask 7168
    %73 = vst.msk [vmem:[#allocation2] sm:$0xff] %vm72, %v67
    %v74 = vmul.f32 %v71, %v70
    %v75 = vadd.f32 %v65, %v74
    %76 = vst.msk [vmem:[#allocation3] sm:$0xff] %vm72, %v75
    %v77 = vadd.f32 %v66, %v63
    %v78 = vmul.f32 %v71, %v71
    %v79 = vmul.f32 %v64, %v70
    %v80 = vmul.f32 %v78, %v79
    %v81 = vadd.f32 %v77, %v80
    %82 = vst.msk [vmem:[#allocation4] sm:$0xff] %vm72, %v81
    // Predicated region
    $region14: #{branch_1_fun.2} parent=1 // pred_check
      %p83 = pneg %p21
    $region15: #{branch_1_fun.2} parent=1 // pred_check_branch
      %85 = sbr.rel (%p83) target = $region17
    $region16: #{branch_1_fun.2} parent=1 // pred_region
      %v86 = vld [vmem:[#allocation2] sm:$0xff]
      %v87 = vld [vmem:[#allocation4] sm:$0xff]
      %v88 = vsub.f32 %v86, 1.0
      %v89 = vmax.f32 %v88, 1.0
      %v90 = vrcp.pop %v89
      %v91 = vmul.f32 %v87, %v90
      %v92 = vadd.f32 %v91, 1e-06
      %v93 = vrsqrt.pop %v92
      %v94 = vmul.f32 %v92, %v93
      %vm95 = vcmp.eq.f32.partialorder %v92, inf
      %v96 = vsel %vm95, %v92, %v94
      %vm97 = vcmp.eq.f32.partialorder %v92, 0.0
      %v98 = vand.u32 %v92, 2147483648
      %v99 = vsel %vm97, %v98, %v96
      %v100 = vld [vmem:[#allocation3] sm:$0xff]
      %102 = vrot.lane.b32.xlu0 %v99, 1
      %v103 = vpop.permute.xlu0 %102
      %v105 = vsel %vm72, %v100, %v103
      %vm106 = vcmask 15360
      %107 = vst.msk [vmem:[#allocation8] sm:$0xff] %vm106, %v105
    $region17: #{branch_1_fun.2} parent=1 // pred_fallthru
      _
    // Predicated region
    $region18: #{branch_1_fun.2} parent=1 // pred_check
      _
    $region19: #{branch_1_fun.2} parent=1 // pred_check_branch
      %109 = sbr.rel (0) target = $region21
    $region20: #{branch_1_fun.2} parent=1 // pred_region
      %s111 = ssub.s32 128, 128
      %112 = vsyncadd [#allocation7], %s111
      %s114 = sshll.u32 [#allocation8], 4
      %s115 = int_to_ptr.vmem [resolvable:$true] %s114
      %117 = dma.vmem_to_hbm [thread:$0]  %s115, 128, %s1, [#allocation7]
    $region21: #{branch_1_fun.2} parent=1 // pred_fallthru
      _
    // Predicated region
    $region22: #{branch_1_fun.2} parent=1 // pred_check
      _
    $region23: #{branch_1_fun.2} parent=1 // pred_check_branch
      %119 = sbr.rel (0) target = $region25
    $region24: #{branch_1_fun.2} parent=1 // pred_region
      %120 = dma.done [#allocation7], 128
    $region25: #{branch_1_fun.2} parent=1 // pred_fallthru
      _
    %121 = vsyncpa [#allocation6], 1
    %122 = vsyncpa [#allocation7], 1

</llo_original>
